<compile_context>
chip_gen: v5e
topology: v5e:2x2
jax: 0.10.0
libtpu: 0.0.40
codegen_flags: <defaults>
</compile_context>

<pallas_src>
import functools

import numpy as np
import jax
import jax.numpy as jnp
from jax.experimental import pallas as pl
from jax.experimental.pallas import tpu as pltpu


# ---------------------------------------------------------------------------
# Pallas kernel: entire TRNN forward (grid-less, everything in VMEM).
#   ms_ref    : (T*B, H)   t-major flattened input
#   rs_w_ref  : (H, H)     tp_rs.weight.T
#   vs_w_ref  : (H, H)     tp_vs.weight.T
#   bias_ref  : (1, H)     tp_rs.bias + tp_vs.bias + tp_bs  (pre-combined)
#   projw_ref : (T*P, 1)   tp_projection.weight, column-major (row t*P+p = w[p,t])
#   projb_ref : (P, 1)     tp_projection.bias
#   out_ref   : (B*P, H)   q flattened (b-major rows); reshaped to (B,P,H) outside
# ---------------------------------------------------------------------------
def trnn_kernel(ms_ref, rs_w_ref, vs_w_ref, bias_ref, projw_ref, projb_ref,
                out_ref, *, batch):
    f32 = jnp.float32
    TB, _ = ms_ref.shape
    B = batch
    T = TB // B
    P = projb_ref.shape[0]

    vs_w = vs_w_ref[...]
    projw = projw_ref[...]                       # (T*P, 1)
    projb = projb_ref[...]                       # (P, 1)

    # (1) Hoisted input projection + fused bias: one (T*B, H) @ (H, H) matmul,
    #     completely off the serial dependency chain.
    rs_all = jnp.dot(ms_ref[...], rs_w_ref[...],
                     preferred_element_type=f32) + bias_ref[...]

    # Pre-split per-step tiles.  These depend only on rs_all / projw, so the
    # scheduler overlaps the extracts with the serial MXU chain.
    rs_steps = [rs_all[t * B:(t + 1) * B, :] for t in range(T)]     # (B, H) each
    w_steps = [projw[t * P:(t + 1) * P, :] for t in range(T)]       # (P, 1) each

    # (2) Serial recurrence.  Only h_{t-1} @ Wvs is on the critical path; t=0
    #     has h_0 == 0, so skip its matmul.  The temporal projection
    #     q[b] += w[:,t] * h_t[b]  is accumulated on the fly (VPU outer-product
    #     adds); it never feeds back into the chain, so it hides under the next
    #     step's MXU latency.  Hidden states never touch VMEM scratch.
    h = jnp.maximum(rs_steps[0], 0.0)
    q = [w_steps[0] * h[b:b + 1, :] for b in range(B)]              # (P, H) each
    for t in range(1, T):                      # static unroll (T is small)
        vh = jnp.dot(h, vs_w, preferred_element_type=f32)           # critical path
        h = jnp.maximum(rs_steps[t] + vh, 0.0)
        for b in range(B):
            q[b] = q[b] + w_steps[t] * h[b:b + 1, :]

    # (3) Epilogue: add projection bias and store.  Rows b*P:(b+1)*P are
    #     sublane-aligned tiles for P == 8.
    for b in range(B):
        out_ref[b * P:(b + 1) * P, :] = q[b] + projb


def trnn_pallas(ms, params):
    T, B, H = ms.shape
    P = params["proj_b"].shape[0]

    # Free layout plumbing (no compute hoisted out of the kernel):
    ms_flat = ms.reshape(T * B, H)             # t-major rows

    kernel = functools.partial(trnn_kernel, batch=B)
    vmem = pltpu.MemorySpace.VMEM
    q_flat = pl.pallas_call(
        kernel,
        out_shape=jax.ShapeDtypeStruct((B * P, H), jnp.float32),
        in_specs=[pl.BlockSpec(memory_space=vmem)] * 6,
        out_specs=pl.BlockSpec(memory_space=vmem),
    )(ms_flat, params["rs_w"], params["vs_w"], params["bias"],
      params["proj_w_col"], params["proj_b"])
    return q_flat.reshape(B, P, H)


# ---------------------------------------------------------------------------
# Deterministic parameter init mirroring TRNN.init_weight (xavier_normal
# weights, zero biases).  All kernel-ready layout transforms happen ONCE here:
# rs/vs weights pre-transposed, the three biases pre-combined, projection
# weight stored column-major (T*P, 1) and projection bias as (P, 1).
# ---------------------------------------------------------------------------
def init_params(key, sample_length, num_hidden, num_projection):
    T, H, P = sample_length, num_hidden, num_projection
    k_rs, k_vs, k_pr = jax.random.split(key, 3)

    def xavier(k, shape):                      # torch Linear weight (out, in)
        fan_out, fan_in = shape
        std = (2.0 / (fan_in + fan_out)) ** 0.5
        return std * jax.random.normal(k, shape, jnp.float32)

    rs_w_t = xavier(k_rs, (H, H))              # tp_rs.weight
    vs_w_t = xavier(k_vs, (H, H))              # tp_vs.weight
    proj_w = xavier(k_pr, (P, T))              # tp_projection.weight

    rs_b = jnp.zeros((H,), jnp.float32)
    vs_b = jnp.zeros((H,), jnp.float32)
    tp_bs = jnp.zeros((H,), jnp.float32)
    proj_b = jnp.zeros((P,), jnp.float32)

    params = {
        "rs_w": rs_w_t.T,                              # (H, H)
        "vs_w": vs_w_t.T,                              # (H, H)
        "bias": (rs_b + vs_b + tp_bs).reshape(1, H),   # combined bias
        "proj_w_col": proj_w.T.reshape(T * P, 1),      # row t*P+p = proj_w[p, t]
        "proj_b": proj_b.reshape(P, 1),                # (P, 1)
    }
    ref_params = {"rs_w": rs_w_t.T, "vs_w": vs_w_t.T, "rs_b": rs_b,
                  "vs_b": vs_b, "tp_bs": tp_bs, "proj_w": proj_w,
                  "proj_b": proj_b}
    return params, ref_params


# Pure-JAX reference mirroring the torch forward (validation only; keeps the
# three biases separate so the bias-fusion / on-the-fly projection is checked).
def trnn_reference(ms, rp):
    T, B, H = ms.shape
    h = jnp.zeros((B, H), jnp.float32)
    hs = []
    for t in range(T):
        h = jnp.maximum(ms[t] @ rp["rs_w"] + rp["rs_b"]
                        + h @ rp["vs_w"] + rp["vs_b"] + rp["tp_bs"], 0.0)
        hs.append(h)
    hidden = jnp.stack(hs, axis=0)                       # (T, B, H) == hiddens[1:]
    q = jnp.einsum("pt,tbh->bph", rp["proj_w"], hidden) + rp["proj_b"][None, :, None]
    return q


if __name__ == "__main__":
    sample_length = 8        # seq length T
    num_hidden = 32          # H
    num_projection = 8       # P
    batch = 2                # B

    key = jax.random.PRNGKey(0)
    k_param, k_x = jax.random.split(key)
    params, ref_params = init_params(k_param, sample_length, num_hidden,
                                     num_projection)
    ms = jax.random.normal(k_x, (sample_length, batch, num_hidden), jnp.float32)

    out = trnn_pallas(ms, params)
    out = jax.block_until_ready(out)

    ref = trnn_reference(ms, ref_params)
    np.testing.assert_allclose(np.asarray(out), np.asarray(ref),
                               rtol=1e-4, atol=1e-4)
    assert out.shape == (batch, num_projection, num_hidden)
    print("KERNEL_OK")
</pallas_src>

<mosaic_0001>
module attributes {stable_mosaic.version = 11 : i64} {
  func.func @trnn_kernel(%arg0: memref<16x32xf32, #tpu.memory_space<vmem>>, %arg1: memref<32x32xf32, #tpu.memory_space<vmem>>, %arg2: memref<32x32xf32, #tpu.memory_space<vmem>>, %arg3: memref<1x32xf32, #tpu.memory_space<vmem>>, %arg4: memref<64x1xf32, #tpu.memory_space<vmem>>, %arg5: memref<8x1xf32, #tpu.memory_space<vmem>>, %arg6: memref<16x32xf32, #tpu.memory_space<vmem>>) attributes {dimension_semantics = [], scalar_prefetch = 0 : i64, scratch_operands = 0 : i64, tpu.core_type = #tpu.core_type<tc>} {
    %c0 = arith.constant 0 : index
    %c0_0 = arith.constant 0 : index
    %0 = vector.load %arg2[%c0, %c0_0] : memref<32x32xf32, #tpu.memory_space<vmem>>, vector<32x32xf32>
    %c0_1 = arith.constant 0 : index
    %c0_2 = arith.constant 0 : index
    %1 = vector.load %arg4[%c0_1, %c0_2] : memref<64x1xf32, #tpu.memory_space<vmem>>, vector<64x1xf32>
    %c0_3 = arith.constant 0 : index
    %c0_4 = arith.constant 0 : index
    %2 = vector.load %arg5[%c0_3, %c0_4] : memref<8x1xf32, #tpu.memory_space<vmem>>, vector<8x1xf32>
    %c0_5 = arith.constant 0 : index
    %c0_6 = arith.constant 0 : index
    %3 = vector.load %arg0[%c0_5, %c0_6] : memref<16x32xf32, #tpu.memory_space<vmem>>, vector<16x32xf32>
    %c0_7 = arith.constant 0 : index
    %c0_8 = arith.constant 0 : index
    %4 = vector.load %arg1[%c0_7, %c0_8] : memref<32x32xf32, #tpu.memory_space<vmem>>, vector<32x32xf32>
    %cst = arith.constant dense<0.000000e+00> : vector<16x32xf32>
    %5 = tpu.matmul %3, %4, %cst {dimension_numbers = #tpu.dot_dimension_numbers<[1], [0], [0], [1], [0, 0, 1, 1], [], []>} : vector<16x32xf32>, vector<32x32xf32>, vector<16x32xf32> -> vector<16x32xf32>
    %c0_9 = arith.constant 0 : index
    %c0_10 = arith.constant 0 : index
    %6 = vector.load %arg3[%c0_9, %c0_10] : memref<1x32xf32, #tpu.memory_space<vmem>>, vector<1x32xf32>
    %7 = vector.broadcast %6 : vector<1x32xf32> to vector<16x32xf32>
    %8 = arith.addf %5, %7 : vector<16x32xf32>
    %9 = vector.extract_strided_slice %8 {offsets = [0, 0], sizes = [2, 32], strides = [1, 1]} : vector<16x32xf32> to vector<2x32xf32>
    %10 = vector.extract_strided_slice %8 {offsets = [2, 0], sizes = [2, 32], strides = [1, 1]} : vector<16x32xf32> to vector<2x32xf32>
    %11 = vector.extract_strided_slice %8 {offsets = [4, 0], sizes = [2, 32], strides = [1, 1]} : vector<16x32xf32> to vector<2x32xf32>
    %12 = vector.extract_strided_slice %8 {offsets = [6, 0], sizes = [2, 32], strides = [1, 1]} : vector<16x32xf32> to vector<2x32xf32>
    %13 = vector.extract_strided_slice %8 {offsets = [8, 0], sizes = [2, 32], strides = [1, 1]} : vector<16x32xf32> to vector<2x32xf32>
    %14 = vector.extract_strided_slice %8 {offsets = [10, 0], sizes = [2, 32], strides = [1, 1]} : vector<16x32xf32> to vector<2x32xf32>
    %15 = vector.extract_strided_slice %8 {offsets = [12, 0], sizes = [2, 32], strides = [1, 1]} : vector<16x32xf32> to vector<2x32xf32>
    %16 = vector.extract_strided_slice %8 {offsets = [14, 0], sizes = [2, 32], strides = [1, 1]} : vector<16x32xf32> to vector<2x32xf32>
    %17 = vector.extract_strided_slice %1 {offsets = [0, 0], sizes = [8, 1], strides = [1, 1]} : vector<64x1xf32> to vector<8x1xf32>
    %18 = vector.extract_strided_slice %1 {offsets = [8, 0], sizes = [8, 1], strides = [1, 1]} : vector<64x1xf32> to vector<8x1xf32>
    %19 = vector.extract_strided_slice %1 {offsets = [16, 0], sizes = [8, 1], strides = [1, 1]} : vector<64x1xf32> to vector<8x1xf32>
    %20 = vector.extract_strided_slice %1 {offsets = [24, 0], sizes = [8, 1], strides = [1, 1]} : vector<64x1xf32> to vector<8x1xf32>
    %21 = vector.extract_strided_slice %1 {offsets = [32, 0], sizes = [8, 1], strides = [1, 1]} : vector<64x1xf32> to vector<8x1xf32>
    %22 = vector.extract_strided_slice %1 {offsets = [40, 0], sizes = [8, 1], strides = [1, 1]} : vector<64x1xf32> to vector<8x1xf32>
    %23 = vector.extract_strided_slice %1 {offsets = [48, 0], sizes = [8, 1], strides = [1, 1]} : vector<64x1xf32> to vector<8x1xf32>
    %24 = vector.extract_strided_slice %1 {offsets = [56, 0], sizes = [8, 1], strides = [1, 1]} : vector<64x1xf32> to vector<8x1xf32>
    %cst_11 = arith.constant 0.000000e+00 : f32
    %25 = vector.broadcast %cst_11 : f32 to vector<2x32xf32>
    %26 = arith.maximumf %9, %25 : vector<2x32xf32>
    %27 = vector.extract_strided_slice %26 {offsets = [0, 0], sizes = [1, 32], strides = [1, 1]} : vector<2x32xf32> to vector<1x32xf32>
    %28 = vector.broadcast %17 : vector<8x1xf32> to vector<8x32xf32>
    %29 = vector.broadcast %27 : vector<1x32xf32> to vector<8x32xf32>
    %30 = arith.mulf %28, %29 : vector<8x32xf32>
    %31 = vector.extract_strided_slice %26 {offsets = [1, 0], sizes = [1, 32], strides = [1, 1]} : vector<2x32xf32> to vector<1x32xf32>
    %32 = vector.broadcast %17 : vector<8x1xf32> to vector<8x32xf32>
    %33 = vector.broadcast %31 : vector<1x32xf32> to vector<8x32xf32>
    %34 = arith.mulf %32, %33 : vector<8x32xf32>
    %cst_12 = arith.constant dense<0.000000e+00> : vector<2x32xf32>
    %35 = tpu.matmul %26, %0, %cst_12 {dimension_numbers = #tpu.dot_dimension_numbers<[1], [0], [0], [1], [0, 0, 1, 1], [], []>} : vector<2x32xf32>, vector<32x32xf32>, vector<2x32xf32> -> vector<2x32xf32>
    %36 = arith.addf %10, %35 : vector<2x32xf32>
    %cst_13 = arith.constant 0.000000e+00 : f32
    %37 = vector.broadcast %cst_13 : f32 to vector<2x32xf32>
    %38 = arith.maximumf %36, %37 : vector<2x32xf32>
    %39 = vector.extract_strided_slice %38 {offsets = [0, 0], sizes = [1, 32], strides = [1, 1]} : vector<2x32xf32> to vector<1x32xf32>
    %40 = vector.broadcast %18 : vector<8x1xf32> to vector<8x32xf32>
    %41 = vector.broadcast %39 : vector<1x32xf32> to vector<8x32xf32>
    %42 = arith.mulf %40, %41 : vector<8x32xf32>
    %43 = arith.addf %30, %42 : vector<8x32xf32>
    %44 = vector.extract_strided_slice %38 {offsets = [1, 0], sizes = [1, 32], strides = [1, 1]} : vector<2x32xf32> to vector<1x32xf32>
    %45 = vector.broadcast %18 : vector<8x1xf32> to vector<8x32xf32>
    %46 = vector.broadcast %44 : vector<1x32xf32> to vector<8x32xf32>
    %47 = arith.mulf %45, %46 : vector<8x32xf32>
    %48 = arith.addf %34, %47 : vector<8x32xf32>
    %cst_14 = arith.constant dense<0.000000e+00> : vector<2x32xf32>
    %49 = tpu.matmul %38, %0, %cst_14 {dimension_numbers = #tpu.dot_dimension_numbers<[1], [0], [0], [1], [0, 0, 1, 1], [], []>} : vector<2x32xf32>, vector<32x32xf32>, vector<2x32xf32> -> vector<2x32xf32>
    %50 = arith.addf %11, %49 : vector<2x32xf32>
    %cst_15 = arith.constant 0.000000e+00 : f32
    %51 = vector.broadcast %cst_15 : f32 to vector<2x32xf32>
    %52 = arith.maximumf %50, %51 : vector<2x32xf32>
    %53 = vector.extract_strided_slice %52 {offsets = [0, 0], sizes = [1, 32], strides = [1, 1]} : vector<2x32xf32> to vector<1x32xf32>
    %54 = vector.broadcast %19 : vector<8x1xf32> to vector<8x32xf32>
    %55 = vector.broadcast %53 : vector<1x32xf32> to vector<8x32xf32>
    %56 = arith.mulf %54, %55 : vector<8x32xf32>
    %57 = arith.addf %43, %56 : vector<8x32xf32>
    %58 = vector.extract_strided_slice %52 {offsets = [1, 0], sizes = [1, 32], strides = [1, 1]} : vector<2x32xf32> to vector<1x32xf32>
    %59 = vector.broadcast %19 : vector<8x1xf32> to vector<8x32xf32>
    %60 = vector.broadcast %58 : vector<1x32xf32> to vector<8x32xf32>
    %61 = arith.mulf %59, %60 : vector<8x32xf32>
    %62 = arith.addf %48, %61 : vector<8x32xf32>
    %cst_16 = arith.constant dense<0.000000e+00> : vector<2x32xf32>
    %63 = tpu.matmul %52, %0, %cst_16 {dimension_numbers = #tpu.dot_dimension_numbers<[1], [0], [0], [1], [0, 0, 1, 1], [], []>} : vector<2x32xf32>, vector<32x32xf32>, vector<2x32xf32> -> vector<2x32xf32>
    %64 = arith.addf %12, %63 : vector<2x32xf32>
    %cst_17 = arith.constant 0.000000e+00 : f32
    %65 = vector.broadcast %cst_17 : f32 to vector<2x32xf32>
    %66 = arith.maximumf %64, %65 : vector<2x32xf32>
    %67 = vector.extract_strided_slice %66 {offsets = [0, 0], sizes = [1, 32], strides = [1, 1]} : vector<2x32xf32> to vector<1x32xf32>
    %68 = vector.broadcast %20 : vector<8x1xf32> to vector<8x32xf32>
    %69 = vector.broadcast %67 : vector<1x32xf32> to vector<8x32xf32>
    %70 = arith.mulf %68, %69 : vector<8x32xf32>
    %71 = arith.addf %57, %70 : vector<8x32xf32>
    %72 = vector.extract_strided_slice %66 {offsets = [1, 0], sizes = [1, 32], strides = [1, 1]} : vector<2x32xf32> to vector<1x32xf32>
    %73 = vector.broadcast %20 : vector<8x1xf32> to vector<8x32xf32>
    %74 = vector.broadcast %72 : vector<1x32xf32> to vector<8x32xf32>
    %75 = arith.mulf %73, %74 : vector<8x32xf32>
    %76 = arith.addf %62, %75 : vector<8x32xf32>
    %cst_18 = arith.constant dense<0.000000e+00> : vector<2x32xf32>
    %77 = tpu.matmul %66, %0, %cst_18 {dimension_numbers = #tpu.dot_dimension_numbers<[1], [0], [0], [1], [0, 0, 1, 1], [], []>} : vector<2x32xf32>, vector<32x32xf32>, vector<2x32xf32> -> vector<2x32xf32>
    %78 = arith.addf %13, %77 : vector<2x32xf32>
    %cst_19 = arith.constant 0.000000e+00 : f32
    %79 = vector.broadcast %cst_19 : f32 to vector<2x32xf32>
    %80 = arith.maximumf %78, %79 : vector<2x32xf32>
    %81 = vector.extract_strided_slice %80 {offsets = [0, 0], sizes = [1, 32], strides = [1, 1]} : vector<2x32xf32> to vector<1x32xf32>
    %82 = vector.broadcast %21 : vector<8x1xf32> to vector<8x32xf32>
    %83 = vector.broadcast %81 : vector<1x32xf32> to vector<8x32xf32>
    %84 = arith.mulf %82, %83 : vector<8x32xf32>
    %85 = arith.addf %71, %84 : vector<8x32xf32>
    %86 = vector.extract_strided_slice %80 {offsets = [1, 0], sizes = [1, 32], strides = [1, 1]} : vector<2x32xf32> to vector<1x32xf32>
    %87 = vector.broadcast %21 : vector<8x1xf32> to vector<8x32xf32>
    %88 = vector.broadcast %86 : vector<1x32xf32> to vector<8x32xf32>
    %89 = arith.mulf %87, %88 : vector<8x32xf32>
    %90 = arith.addf %76, %89 : vector<8x32xf32>
    %cst_20 = arith.constant dense<0.000000e+00> : vector<2x32xf32>
    %91 = tpu.matmul %80, %0, %cst_20 {dimension_numbers = #tpu.dot_dimension_numbers<[1], [0], [0], [1], [0, 0, 1, 1], [], []>} : vector<2x32xf32>, vector<32x32xf32>, vector<2x32xf32> -> vector<2x32xf32>
    %92 = arith.addf %14, %91 : vector<2x32xf32>
    %cst_21 = arith.constant 0.000000e+00 : f32
    %93 = vector.broadcast %cst_21 : f32 to vector<2x32xf32>
    %94 = arith.maximumf %92, %93 : vector<2x32xf32>
    %95 = vector.extract_strided_slice %94 {offsets = [0, 0], sizes = [1, 32], strides = [1, 1]} : vector<2x32xf32> to vector<1x32xf32>
    %96 = vector.broadcast %22 : vector<8x1xf32> to vector<8x32xf32>
    %97 = vector.broadcast %95 : vector<1x32xf32> to vector<8x32xf32>
    %98 = arith.mulf %96, %97 : vector<8x32xf32>
    %99 = arith.addf %85, %98 : vector<8x32xf32>
    %100 = vector.extract_strided_slice %94 {offsets = [1, 0], sizes = [1, 32], strides = [1, 1]} : vector<2x32xf32> to vector<1x32xf32>
    %101 = vector.broadcast %22 : vector<8x1xf32> to vector<8x32xf32>
    %102 = vector.broadcast %100 : vector<1x32xf32> to vector<8x32xf32>
    %103 = arith.mulf %101, %102 : vector<8x32xf32>
    %104 = arith.addf %90, %103 : vector<8x32xf32>
    %cst_22 = arith.constant dense<0.000000e+00> : vector<2x32xf32>
    %105 = tpu.matmul %94, %0, %cst_22 {dimension_numbers = #tpu.dot_dimension_numbers<[1], [0], [0], [1], [0, 0, 1, 1], [], []>} : vector<2x32xf32>, vector<32x32xf32>, vector<2x32xf32> -> vector<2x32xf32>
    %106 = arith.addf %15, %105 : vector<2x32xf32>
    %cst_23 = arith.constant 0.000000e+00 : f32
    %107 = vector.broadcast %cst_23 : f32 to vector<2x32xf32>
    %108 = arith.maximumf %106, %107 : vector<2x32xf32>
    %109 = vector.extract_strided_slice %108 {offsets = [0, 0], sizes = [1, 32], strides = [1, 1]} : vector<2x32xf32> to vector<1x32xf32>
    %110 = vector.broadcast %23 : vector<8x1xf32> to vector<8x32xf32>
    %111 = vector.broadcast %109 : vector<1x32xf32> to vector<8x32xf32>
    %112 = arith.mulf %110, %111 : vector<8x32xf32>
    %113 = arith.addf %99, %112 : vector<8x32xf32>
    %114 = vector.extract_strided_slice %108 {offsets = [1, 0], sizes = [1, 32], strides = [1, 1]} : vector<2x32xf32> to vector<1x32xf32>
    %115 = vector.broadcast %23 : vector<8x1xf32> to vector<8x32xf32>
    %116 = vector.broadcast %114 : vector<1x32xf32> to vector<8x32xf32>
    %117 = arith.mulf %115, %116 : vector<8x32xf32>
    %118 = arith.addf %104, %117 : vector<8x32xf32>
    %cst_24 = arith.constant dense<0.000000e+00> : vector<2x32xf32>
    %119 = tpu.matmul %108, %0, %cst_24 {dimension_numbers = #tpu.dot_dimension_numbers<[1], [0], [0], [1], [0, 0, 1, 1], [], []>} : vector<2x32xf32>, vector<32x32xf32>, vector<2x32xf32> -> vector<2x32xf32>
    %120 = arith.addf %16, %119 : vector<2x32xf32>
    %cst_25 = arith.constant 0.000000e+00 : f32
    %121 = vector.broadcast %cst_25 : f32 to vector<2x32xf32>
    %122 = arith.maximumf %120, %121 : vector<2x32xf32>
    %123 = vector.extract_strided_slice %122 {offsets = [0, 0], sizes = [1, 32], strides = [1, 1]} : vector<2x32xf32> to vector<1x32xf32>
    %124 = vector.broadcast %24 : vector<8x1xf32> to vector<8x32xf32>
    %125 = vector.broadcast %123 : vector<1x32xf32> to vector<8x32xf32>
    %126 = arith.mulf %124, %125 : vector<8x32xf32>
    %127 = arith.addf %113, %126 : vector<8x32xf32>
    %128 = vector.extract_strided_slice %122 {offsets = [1, 0], sizes = [1, 32], strides = [1, 1]} : vector<2x32xf32> to vector<1x32xf32>
    %129 = vector.broadcast %24 : vector<8x1xf32> to vector<8x32xf32>
    %130 = vector.broadcast %128 : vector<1x32xf32> to vector<8x32xf32>
    %131 = arith.mulf %129, %130 : vector<8x32xf32>
    %132 = arith.addf %118, %131 : vector<8x32xf32>
    %133 = vector.broadcast %2 : vector<8x1xf32> to vector<8x32xf32>
    %134 = arith.addf %127, %133 : vector<8x32xf32>
    %c0_26 = arith.constant 0 : index
    %c0_27 = arith.constant 0 : index
    %135 = vector.load %arg6[%c0_26, %c0_27] : memref<16x32xf32, #tpu.memory_space<vmem>>, vector<8x32xf32>
    tpu.vector_store %arg6[%c0_26, %c0_27], %134 {strides = array<i32>} : memref<16x32xf32, #tpu.memory_space<vmem>>, vector<8x32xf32>,
    %136 = vector.broadcast %2 : vector<8x1xf32> to vector<8x32xf32>
    %137 = arith.addf %132, %136 : vector<8x32xf32>
    %c8 = arith.constant 8 : index
    %c0_28 = arith.constant 0 : index
    %138 = vector.load %arg6[%c8, %c0_28] : memref<16x32xf32, #tpu.memory_space<vmem>>, vector<8x32xf32>
    tpu.vector_store %arg6[%c8, %c0_28], %137 {strides = array<i32>} : memref<16x32xf32, #tpu.memory_space<vmem>>, vector<8x32xf32>,
    return
  }
}

</mosaic_0001>

<llo_original>
// kernel: tpu_custom_call.1
$region0: #{tpu_custom_call.1}
  #allocation0 [shape = 'u32[]', space=smem, size = 0x4, offset = 0x4, fixed_abs, tag = 'smem constant byte address 0x4 - core index']
  #allocation1 [shape = 'u32[72,128]{1,0:T(1,128)}', space=vmem, size = 0x9000, scoped, tag = 'internal scratch']
  %s0 = inlined_call_operand.hbm [shape: f32[16,32], index: 0, kind: input, shape index: {}]
  %s1 = inlined_call_operand.vmem [shape: f32[32,32], index: 1, kind: input, shape index: {}]
  %s2 = inlined_call_operand.vmem [shape: f32[32,32], index: 2, kind: input, shape index: {}]
  %s3 = inlined_call_operand.vmem [shape: f32[1,32], index: 3, kind: input, shape index: {}]
  %s4 = inlined_call_operand.vmem [shape: f32[64,1], index: 4, kind: input, shape index: {}]
  %s5 = inlined_call_operand.vmem [shape: f32[8,1], index: 5, kind: input, shape index: {}]
  %s6 = inlined_call_operand.hbm [shape: f32[16,32], index: 6, kind: output, shape index: {}]
  %s7 = sld [smem:[#allocation0]]
  $region38: #{tpu_custom_call.1} parent=0
    _
  %s9 = ssub.s32 1, %s7
  %s10 = scalar_select 0, %s9, %s7
  $region1: #{tpu_custom_call.1} parent=0
    #allocation2 [shape = 'u8[8192]{0}', space=vmem, size = 0x2000, scoped, tag = 'input window, operand 0, single buffered']
    #allocation3 [shape = 's32[1]{0}', space=sflag, size = 0x4, scoped, tag = 'scoped memory for tpu_custom_call.1']
    #allocation4 [shape = 's32[1]{0}', space=sflag, size = 0x4, scoped, tag = 'scoped memory for tpu_custom_call.1']
    #allocation5 [shape = 'u8[8192]{0}', space=vmem, size = 0x2000, scoped, tag = 'output window, operand 0, single buffered']
    %11 = vsyncpa [#allocation3], 0
    %12 = vsyncpa [#allocation4], 0
    // Predicated region
    $region2: #{tpu_custom_call.1} parent=1 // pred_check
      _
    $region3: #{tpu_custom_call.1} parent=1 // pred_check_branch
      %14 = sbr.rel (0) target = $region5
    $region4: #{tpu_custom_call.1} parent=1 // pred_region
      %16 = vsyncadd [#allocation3], 0
      %s17 = sshll.u32 %s0, 4
      %s18 = int_to_ptr.hbm [resolvable:$true] %s17
      %s19 = sshll.u32 [#allocation2], 4
      %s20 = int_to_ptr.vmem [resolvable:$true] %s19
      %25 = dma.hbm_to_vmem [thread:$0]  %s18, 256, %s20, [#allocation3], 128, 128, 8
    $region5: #{tpu_custom_call.1} parent=1 // pred_fallthru
      _
    // Predicated region
    $region6: #{tpu_custom_call.1} parent=1 // pred_check
      _
    $region7: #{tpu_custom_call.1} parent=1 // pred_check_branch
      %27 = sbr.rel (0) target = $region9
    $region8: #{tpu_custom_call.1} parent=1 // pred_region
      _
    $region9: #{tpu_custom_call.1} parent=1 // pred_fallthru
      _
    // Predicated region
    $region10: #{tpu_custom_call.1} parent=1 // pred_check
      _
    $region11: #{tpu_custom_call.1} parent=1 // pred_check_branch
      %29 = sbr.rel (0) target = $region13
    $region12: #{tpu_custom_call.1} parent=1 // pred_region
      _
    $region13: #{tpu_custom_call.1} parent=1 // pred_fallthru
      _
    // Predicated region
    $region14: #{tpu_custom_call.1} parent=1 // pred_check
      _
    $region15: #{tpu_custom_call.1} parent=1 // pred_check_branch
      %31 = sbr.rel (0) target = $region17
    $region16: #{tpu_custom_call.1} parent=1 // pred_region
      _
    $region17: #{tpu_custom_call.1} parent=1 // pred_fallthru
      _
    // Predicated region
    $region18: #{tpu_custom_call.1} parent=1 // pred_check
      _
    $region19: #{tpu_custom_call.1} parent=1 // pred_check_branch
      %33 = sbr.rel (0) target = $region21
    $region20: #{tpu_custom_call.1} parent=1 // pred_region
      _
    $region21: #{tpu_custom_call.1} parent=1 // pred_fallthru
      _
    // Predicated region
    $region22: #{tpu_custom_call.1} parent=1 // pred_check
      _
    $region23: #{tpu_custom_call.1} parent=1 // pred_check_branch
      %35 = sbr.rel (0) target = $region25
    $region24: #{tpu_custom_call.1} parent=1 // pred_region
      _
    $region25: #{tpu_custom_call.1} parent=1 // pred_fallthru
      _
    // Predicated region
    $region26: #{tpu_custom_call.1} parent=1 // pred_check
      _
    $region27: #{tpu_custom_call.1} parent=1 // pred_check_branch
      %37 = sbr.rel (0) target = $region29
    $region28: #{tpu_custom_call.1} parent=1 // pred_region
      %39 = dma.done [#allocation3], 256
    $region29: #{tpu_custom_call.1} parent=1 // pred_fallthru
      _
    %v40 = vld [vmem:[%s2] sm:$0xff]
    %v41 = vld [vmem:[%s2 + $0x8] sm:$0xff]
    %v42 = vld [vmem:[%s2 + $0x10] sm:$0xff]
    %v43 = vld [vmem:[%s2 + $0x18] sm:$0xff]
    %v44 = vld [vmem:[%s4] sm:$0xff]
    %v45 = vld [vmem:[%s4 + $0x8] sm:$0xff]
    %v46 = vld [vmem:[%s4 + $0x10] sm:$0xff]
    %v47 = vld [vmem:[%s4 + $0x18] sm:$0xff]
    %v48 = vld [vmem:[%s4 + $0x20] sm:$0xff]
    %v49 = vld [vmem:[%s4 + $0x28] sm:$0xff]
    %v50 = vld [vmem:[%s4 + $0x30] sm:$0xff]
    %v51 = vld [vmem:[%s4 + $0x38] sm:$0xff]
    %v52 = vld [vmem:[%s5] sm:$0xff]
    %v53 = vld [vmem:[#allocation2] sm:$0xff]
    %v54 = vld [vmem:[#allocation2 + $0x8] sm:$0xff]
    %v55 = vld [vmem:[%s1] sm:$0xff]
    %v56 = vld [vmem:[%s1 + $0x8] sm:$0xff]
    %v57 = vld [vmem:[%s1 + $0x10] sm:$0xff]
    %v58 = vld [vmem:[%s1 + $0x18] sm:$0xff]
    %v59 = vld [vmem:[%s3] sm:$0x1]
    %v61 = vperm.slane %v59, 0
    %vm63 = vcmask 261120
    %v65 = vsel %vm63, %v53, 0
    %v68 = vsel %vm63, %v54, 0
    %70 = vmatpush.msra.mxu0 0.0
    %71 = vmatpush.msra.mxu0 0.0
    %72 = vmatpush.msra.mxu0 0.0
    %73 = vmatpush.msra.mxu0 0.0
    %74 = vmatpush.msra.mxu0 0.0
    %75 = vmatpush.msra.mxu0 0.0
    %76 = vmatpush.msra.mxu0 0.0
    %77 = vmatpush.msra.mxu0 0.0
    %78 = vmatpush.msra.mxu0 0.0
    %79 = vmatpush.msra.mxu0 0.0
    %80 = vmatpush.msra.mxu0 0.0
    %81 = vmatpush.msra.mxu0 0.0
    %82 = vmatpush.msra.mxu0 %v58
    %83 = vmatpush.msra.mxu0 %v57
    %84 = vmatpush.msra.mxu0 %v56
    %85 = vmatpush.msra.mxu0 %v55
    %86 = vmatmul.f32.gmra.mxu0 %v65
    %v87 = vpop.f32.mrf.mxu0
    %v88 = vadd.f32 %v61, %v87
    %89 = vmatmul.f32.gmra.mxu0 %v68
    %v90 = vpop.f32.mrf.mxu0
    %v91 = vadd.f32 %v61, %v90
    %92 = vdwg.mxu0
    %v93 = vmax.f32 %v88, 0.0
    %95 = vset.pattern.permute.xlu0 0
    %96 = vperm.xlu0 %95, %v44
    %v97 = vpop.permute.xlu0 %96
    %v99 = vperm.slane %v93, 0
    %v100 = vmul.f32 %v97, %v99
    %v101 = vperm.slane %v93, 1
    %v102 = vmul.f32 %v97, %v101
    %v104 = vsel %vm63, %v93, 0
    %106 = vmatpush.msra.mxu0 0.0
    %107 = vmatpush.msra.mxu0 0.0
    %108 = vmatpush.msra.mxu0 0.0
    %109 = vmatpush.msra.mxu0 0.0
    %110 = vmatpush.msra.mxu0 0.0
    %111 = vmatpush.msra.mxu0 0.0
    %112 = vmatpush.msra.mxu0 0.0
    %113 = vmatpush.msra.mxu0 0.0
    %114 = vmatpush.msra.mxu0 0.0
    %115 = vmatpush.msra.mxu0 0.0
    %116 = vmatpush.msra.mxu0 0.0
    %117 = vmatpush.msra.mxu0 0.0
    %118 = vmatpush.msra.mxu0 %v43
    %119 = vmatpush.msra.mxu0 %v42
    %120 = vmatpush.msra.mxu0 %v41
    %121 = vmatpush.msra.mxu0 %v40
    %122 = vmatmul.f32.gmra.mxu0 %v104
    %v123 = vpop.f32.mrf.mxu0
    %v124 = vadd.f32 0.0, %v123
    %125 = vdwg.mxu0
    %v127 = vrot.slane %v124, 6
    %v129 = vadd.f32 %v88, %v127
    %v130 = vmax.f32 %v129, 0.0
    %132 = vset.pattern.permute.xlu0 0
    %133 = vperm.xlu0 %132, %v45
    %v134 = vpop.permute.xlu0 %133
    %v136 = vperm.slane %v130, 2
    %v137 = vmul.f32 %v134, %v136
    %v138 = vadd.f32 %v100, %v137
    %v139 = vperm.slane %v130, 3
    %v140 = vmul.f32 %v134, %v139
    %v141 = vadd.f32 %v102, %v140
    %v143 = vrot.slane %v130, 2
    %v144 = vsel %vm63, %v143, 0
    %146 = vmatpush.msra.mxu0 0.0
    %147 = vmatpush.msra.mxu0 0.0
    %148 = vmatpush.msra.mxu0 0.0
    %149 = vmatpush.msra.mxu0 0.0
    %150 = vmatpush.msra.mxu0 0.0
    %151 = vmatpush.msra.mxu0 0.0
    %152 = vmatpush.msra.mxu0 0.0
    %153 = vmatpush.msra.mxu0 0.0
    %154 = vmatpush.msra.mxu0 0.0
    %155 = vmatpush.msra.mxu0 0.0
    %156 = vmatpush.msra.mxu0 0.0
    %157 = vmatpush.msra.mxu0 0.0
    %158 = vmatpush.msra.mxu0 %v43
    %159 = vmatpush.msra.mxu0 %v42
    %160 = vmatpush.msra.mxu0 %v41
    %161 = vmatpush.msra.mxu0 %v40
    %162 = vmatmul.f32.gmra.mxu0 %v144
    %v163 = vpop.f32.mrf.mxu0
    %v164 = vadd.f32 0.0, %v163
    %165 = vdwg.mxu0
    %v167 = vrot.slane %v164, 4
    %v169 = vadd.f32 %v88, %v167
    %v170 = vmax.f32 %v169, 0.0
    %172 = vset.pattern.permute.xlu0 0
    %173 = vperm.xlu0 %172, %v46
    %v174 = vpop.permute.xlu0 %173
    %v176 = vperm.slane %v170, 4
    %v177 = vmul.f32 %v174, %v176
    %v178 = vadd.f32 %v138, %v177
    %v179 = vperm.slane %v170, 5
    %v180 = vmul.f32 %v174, %v179
    %v181 = vadd.f32 %v141, %v180
    %v183 = vrot.slane %v170, 4
    %v184 = vsel %vm63, %v183, 0
    %186 = vmatpush.msra.mxu0 0.0
    %187 = vmatpush.msra.mxu0 0.0
    %188 = vmatpush.msra.mxu0 0.0
    %189 = vmatpush.msra.mxu0 0.0
    %190 = vmatpush.msra.mxu0 0.0
    %191 = vmatpush.msra.mxu0 0.0
    %192 = vmatpush.msra.mxu0 0.0
    %193 = vmatpush.msra.mxu0 0.0
    %194 = vmatpush.msra.mxu0 0.0
    %195 = vmatpush.msra.mxu0 0.0
    %196 = vmatpush.msra.mxu0 0.0
    %197 = vmatpush.msra.mxu0 0.0
    %198 = vmatpush.msra.mxu0 %v43
    %199 = vmatpush.msra.mxu0 %v42
    %200 = vmatpush.msra.mxu0 %v41
    %201 = vmatpush.msra.mxu0 %v40
    %202 = vmatmul.f32.gmra.mxu0 %v184
    %v203 = vpop.f32.mrf.mxu0
    %v204 = vadd.f32 0.0, %v203
    %205 = vdwg.mxu0
    %v207 = vrot.slane %v204, 2
    %v209 = vadd.f32 %v88, %v207
    %v210 = vmax.f32 %v209, 0.0
    %212 = vset.pattern.permute.xlu0 0
    %213 = vperm.xlu0 %212, %v47
    %v214 = vpop.permute.xlu0 %213
    %v216 = vperm.slane %v210, 6
    %v217 = vmul.f32 %v214, %v216
    %v218 = vadd.f32 %v178, %v217
    %v219 = vperm.slane %v210, 7
    %v220 = vmul.f32 %v214, %v219
    %v221 = vadd.f32 %v181, %v220
    %v223 = vrot.slane %v210, 6
    %v224 = vsel %vm63, %v223, 0
    %226 = vmatpush.msra.mxu0 0.0
    %227 = vmatpush.msra.mxu0 0.0
    %228 = vmatpush.msra.mxu0 0.0
    %229 = vmatpush.msra.mxu0 0.0
    %230 = vmatpush.msra.mxu0 0.0
    %231 = vmatpush.msra.mxu0 0.0
    %232 = vmatpush.msra.mxu0 0.0
    %233 = vmatpush.msra.mxu0 0.0
    %234 = vmatpush.msra.mxu0 0.0
    %235 = vmatpush.msra.mxu0 0.0
    %236 = vmatpush.msra.mxu0 0.0
    %237 = vmatpush.msra.mxu0 0.0
    %238 = vmatpush.msra.mxu0 %v43
    %239 = vmatpush.msra.mxu0 %v42
    %240 = vmatpush.msra.mxu0 %v41
    %241 = vmatpush.msra.mxu0 %v40
    %242 = vmatmul.f32.gmra.mxu0 %v224
    %v243 = vpop.f32.mrf.mxu0
    %v244 = vadd.f32 0.0, %v243
    %245 = vdwg.mxu0
    %v246 = vadd.f32 %v91, %v244
    %v247 = vmax.f32 %v246, 0.0
    %249 = vset.pattern.permute.xlu0 0
    %250 = vperm.xlu0 %249, %v48
    %v251 = vpop.permute.xlu0 %250
    %v253 = vperm.slane %v247, 0
    %v254 = vmul.f32 %v251, %v253
    %v255 = vadd.f32 %v218, %v254
    %v256 = vperm.slane %v247, 1
    %v257 = vmul.f32 %v251, %v256
    %v258 = vadd.f32 %v221, %v257
    %v260 = vsel %vm63, %v247, 0
    %262 = vmatpush.msra.mxu0 0.0
    %263 = vmatpush.msra.mxu0 0.0
    %264 = vmatpush.msra.mxu0 0.0
    %265 = vmatpush.msra.mxu0 0.0
    %266 = vmatpush.msra.mxu0 0.0
    %267 = vmatpush.msra.mxu0 0.0
    %268 = vmatpush.msra.mxu0 0.0
    %269 = vmatpush.msra.mxu0 0.0
    %270 = vmatpush.msra.mxu0 0.0
    %271 = vmatpush.msra.mxu0 0.0
    %272 = vmatpush.msra.mxu0 0.0
    %273 = vmatpush.msra.mxu0 0.0
    %274 = vmatpush.msra.mxu0 %v43
    %275 = vmatpush.msra.mxu0 %v42
    %276 = vmatpush.msra.mxu0 %v41
    %277 = vmatpush.msra.mxu0 %v40
    %278 = vmatmul.f32.gmra.mxu0 %v260
    %v279 = vpop.f32.mrf.mxu0
    %v280 = vadd.f32 0.0, %v279
    %281 = vdwg.mxu0
    %v283 = vrot.slane %v280, 6
    %v285 = vadd.f32 %v91, %v283
    %v286 = vmax.f32 %v285, 0.0
    %288 = vset.pattern.permute.xlu0 0
    %289 = vperm.xlu0 %288, %v49
    %v290 = vpop.permute.xlu0 %289
    %v292 = vperm.slane %v286, 2
    %v293 = vmul.f32 %v290, %v292
    %v294 = vadd.f32 %v255, %v293
    %v295 = vperm.slane %v286, 3
    %v296 = vmul.f32 %v290, %v295
    %v297 = vadd.f32 %v258, %v296
    %v299 = vrot.slane %v286, 2
    %v300 = vsel %vm63, %v299, 0
    %302 = vmatpush.msra.mxu0 0.0
    %303 = vmatpush.msra.mxu0 0.0
    %304 = vmatpush.msra.mxu0 0.0
    %305 = vmatpush.msra.mxu0 0.0
    %306 = vmatpush.msra.mxu0 0.0
    %307 = vmatpush.msra.mxu0 0.0
    %308 = vmatpush.msra.mxu0 0.0
    %309 = vmatpush.msra.mxu0 0.0
    %310 = vmatpush.msra.mxu0 0.0
    %311 = vmatpush.msra.mxu0 0.0
    %312 = vmatpush.msra.mxu0 0.0
    %313 = vmatpush.msra.mxu0 0.0
    %314 = vmatpush.msra.mxu0 %v43
    %315 = vmatpush.msra.mxu0 %v42
    %316 = vmatpush.msra.mxu0 %v41
    %317 = vmatpush.msra.mxu0 %v40
    %318 = vmatmul.f32.gmra.mxu0 %v300
    %v319 = vpop.f32.mrf.mxu0
    %v320 = vadd.f32 0.0, %v319
    %321 = vdwg.mxu0
    %v323 = vrot.slane %v320, 4
    %v325 = vadd.f32 %v91, %v323
    %v326 = vmax.f32 %v325, 0.0
    %328 = vset.pattern.permute.xlu0 0
    %329 = vperm.xlu0 %328, %v50
    %v330 = vpop.permute.xlu0 %329
    %v332 = vperm.slane %v326, 4
    %v333 = vmul.f32 %v330, %v332
    %v334 = vadd.f32 %v294, %v333
    %v335 = vperm.slane %v326, 5
    %v336 = vmul.f32 %v330, %v335
    %v337 = vadd.f32 %v297, %v336
    %v339 = vrot.slane %v326, 4
    %v340 = vsel %vm63, %v339, 0
    %342 = vmatpush.msra.mxu0 0.0
    %343 = vmatpush.msra.mxu0 0.0
    %344 = vmatpush.msra.mxu0 0.0
    %345 = vmatpush.msra.mxu0 0.0
    %346 = vmatpush.msra.mxu0 0.0
    %347 = vmatpush.msra.mxu0 0.0
    %348 = vmatpush.msra.mxu0 0.0
    %349 = vmatpush.msra.mxu0 0.0
    %350 = vmatpush.msra.mxu0 0.0
    %351 = vmatpush.msra.mxu0 0.0
    %352 = vmatpush.msra.mxu0 0.0
    %353 = vmatpush.msra.mxu0 0.0
    %354 = vmatpush.msra.mxu0 %v43
    %355 = vmatpush.msra.mxu0 %v42
    %356 = vmatpush.msra.mxu0 %v41
    %357 = vmatpush.msra.mxu0 %v40
    %358 = vmatmul.f32.gmra.mxu0 %v340
    %v359 = vpop.f32.mrf.mxu0
    %v360 = vadd.f32 0.0, %v359
    %361 = vdwg.mxu0
    %v363 = vrot.slane %v360, 2
    %v365 = vadd.f32 %v91, %v363
    %v366 = vmax.f32 %v365, 0.0
    %368 = vset.pattern.permute.xlu0 0
    %369 = vperm.xlu0 %368, %v51
    %v370 = vpop.permute.xlu0 %369
    %v372 = vperm.slane %v366, 6
    %v373 = vmul.f32 %v370, %v372
    %v374 = vadd.f32 %v334, %v373
    %v375 = vperm.slane %v366, 7
    %v376 = vmul.f32 %v370, %v375
    %v377 = vadd.f32 %v337, %v376
    %379 = vset.pattern.permute.xlu0 0
    %380 = vperm.xlu0 %379, %v52
    %v381 = vpop.permute.xlu0 %380
    %v383 = vadd.f32 %v374, %v381
    %384 = vst.msk [vmem:[#allocation5] sm:$0xff] %vm63, %v383
    %v385 = vadd.f32 %v377, %v381
    %386 = vst.msk [vmem:[#allocation5 + $0x8] sm:$0xff] %vm63, %v385
    // Predicated region
    $region30: #{tpu_custom_call.1} parent=1 // pred_check
      _
    $region31: #{tpu_custom_call.1} parent=1 // pred_check_branch
      %388 = sbr.rel (0) target = $region33
    $region32: #{tpu_custom_call.1} parent=1 // pred_region
      %390 = vsyncadd [#allocation4], 0
      %s391 = sshll.u32 [#allocation5], 4
      %s392 = int_to_ptr.vmem [resolvable:$true] %s391
      %s393 = sshll.u32 %s6, 4
      %s394 = int_to_ptr.hbm [resolvable:$true] %s393
      %399 = dma.vmem_to_hbm [thread:$0]  %s392, 256, %s394, [#allocation4], 128, 128, 8
    $region33: #{tpu_custom_call.1} parent=1 // pred_fallthru
      _
    // Predicated region
    $region34: #{tpu_custom_call.1} parent=1 // pred_check
      _
    $region35: #{tpu_custom_call.1} parent=1 // pred_check_branch
      %401 = sbr.rel (0) target = $region37
    $region36: #{tpu_custom_call.1} parent=1 // pred_region
      %403 = dma.done [#allocation4], 256
    $region37: #{tpu_custom_call.1} parent=1 // pred_fallthru
      _
    %404 = vsyncpa [#allocation3], 1
    %405 = vsyncpa [#allocation4], 1

</llo_original>
